<compile_context>
chip_gen: v7x
topology: tpu7x:2x2x1
jax: 0.10.0
libtpu: 0.0.40
codegen_flags: <defaults>
</compile_context>

<pallas_src>
import functools

import jax
import jax.numpy as jnp
from jax.experimental import pallas as pl
from jax.experimental.pallas import tpu as pltpu


def _latent_encoder_kernel(
    h_ref,            # (tm, H)          matmul dtype (f32 or bf16)
    w1_ref, b1_ref,   # (H, 2*H2) fused mu|logsigma first layer, (1, 2*H2) f32 bias
    w2_ref, b2_ref,   # (2*H2, 2L) block-diagonal second layer, (1, 2L) f32 bias
    eps_ref,          # (tm, L)  f32, eps ~ U[0,1)
    out_ref,          # (tm, 3L) packed [z | mu | logsigma]
    *,
    latent_dim,
):
    L = latent_dim

    # ---- fused first layer for BOTH heads: one MXU push, f32 accumulation ----
    pre = jnp.dot(h_ref[...], w1_ref[...], preferred_element_type=jnp.float32) + b1_ref[...]
    hid = jnp.tanh(pre)                                           # (tm, 2*H2), f32 (EUP)

    # ---- fused (block-diagonal) second layer: one MXU push -> [mu | logsigma] ----
    mu_ls = (
        jnp.dot(hid.astype(w2_ref.dtype), w2_ref[...], preferred_element_type=jnp.float32)
        + b2_ref[...]
    )                                                             # (tm, 2L), f32
    mu = mu_ls[:, :L]
    logsigma = mu_ls[:, L:]

    # ---- reparameterization: z = mu + eps * exp(0.5 * logsigma), all f32 element-wise ----
    z = mu + eps_ref[...].astype(jnp.float32) * jnp.exp(logsigma * 0.5)

    # ---- single lane-dense packed store ----
    out_ref[...] = jnp.concatenate([z, mu, logsigma], axis=-1).astype(out_ref.dtype)


def latent_encoder_forward(hidden, params, eps, *, tm=256, matmul_dtype=jnp.bfloat16):
    """hidden: (B, H) f32; eps: (B, L) f32 ~ U[0,1); params: dict of (in,out)-layout weights.

    Returns (z, mu, logsigma), each (B, L) f32.
    """
    B, H = hidden.shape
    H2 = params["w1m"].shape[1]
    L = params["w2m"].shape[1]
    f32 = jnp.float32

    # ----- fuse the two heads (done once, outside the kernel) -----
    w1 = jnp.concatenate([params["w1m"], params["w1s"]], axis=1).astype(matmul_dtype)  # (H, 2*H2)
    b1 = jnp.concatenate([params["b1m"], params["b1s"]], axis=1).astype(f32)           # (1, 2*H2)
    zeros = jnp.zeros((H2, L), f32)
    w2 = jnp.concatenate(
        [jnp.concatenate([params["w2m"], zeros], axis=1),
         jnp.concatenate([zeros, params["w2s"]], axis=1)],
        axis=0,
    ).astype(matmul_dtype)                                                             # (2*H2, 2L)
    b2 = jnp.concatenate([params["b2m"], params["b2s"]], axis=1).astype(f32)           # (1, 2L)

    # ----- batch tiling: big tile, pad B instead of shrinking tm -----
    tm_eff = min(tm, max(8, ((B + 7) // 8) * 8))
    nb = pl.cdiv(B, tm_eff)
    B_pad = nb * tm_eff
    if B_pad != B:
        hidden = jnp.pad(hidden, ((0, B_pad - B), (0, 0)))
        eps = jnp.pad(eps, ((0, B_pad - B), (0, 0)))
    hidden = hidden.astype(matmul_dtype)   # bf16 input halves HBM traffic of the big operand
    eps = eps.astype(f32)

    full_spec = lambda a: pl.BlockSpec(a.shape, lambda i: (0,) * a.ndim)   # resident weights
    row_spec = lambda d: pl.BlockSpec((tm_eff, d), lambda i: (i, 0))       # batch-tiled

    grid_spec = pl.GridSpec(
        grid=(nb,),
        in_specs=[
            row_spec(H),                     # hidden tile
            full_spec(w1), full_spec(b1),    # fused first layer
            full_spec(w2), full_spec(b2),    # fused (block-diag) second layer
            row_spec(L),                     # eps tile
        ],
        out_specs=pl.BlockSpec((tm_eff, 3 * L), lambda i: (i, 0)),
    )

    packed = pl.pallas_call(
        functools.partial(_latent_encoder_kernel, latent_dim=L),
        grid_spec=grid_spec,
        out_shape=jax.ShapeDtypeStruct((B_pad, 3 * L), f32),
        compiler_params=pltpu.CompilerParams(dimension_semantics=("parallel",)),
    )(hidden, w1, b1, w2, b2, eps)

    z = packed[:B, :L]
    mu = packed[:B, L:2 * L]
    logsigma = packed[:B, 2 * L:]
    return z, mu, logsigma


def make_params(key, hidden_dim, latent_dim):
    """Deterministic synthetic parameters, stored (in_features, out_features) so kernel does x@W+b."""
    H, L, H2 = hidden_dim, latent_dim, hidden_dim * 2
    ks = jax.random.split(key, 8)
    scale = 0.1
    return {
        "w1m": scale * jax.random.normal(ks[0], (H, H2), jnp.float32),
        "b1m": scale * jax.random.normal(ks[1], (1, H2), jnp.float32),
        "w2m": scale * jax.random.normal(ks[2], (H2, L), jnp.float32),
        "b2m": scale * jax.random.normal(ks[3], (1, L), jnp.float32),
        "w1s": scale * jax.random.normal(ks[4], (H, H2), jnp.float32),
        "b1s": scale * jax.random.normal(ks[5], (1, H2), jnp.float32),
        "w2s": scale * jax.random.normal(ks[6], (H2, L), jnp.float32),
        "b2s": scale * jax.random.normal(ks[7], (1, L), jnp.float32),
    }


def reference_forward(hidden, params, eps):
    """Pure-JAX reference mirroring the PyTorch forward."""
    mu = jnp.tanh(hidden @ params["w1m"] + params["b1m"]) @ params["w2m"] + params["b2m"]
    ls = jnp.tanh(hidden @ params["w1s"] + params["b1s"]) @ params["w2s"] + params["b2s"]
    z = mu + eps * jnp.exp(ls * 0.5)
    return z, mu, ls


if __name__ == "__main__":
    hidden_dim = 32
    latent_dim = 16
    batch = 16

    key = jax.random.PRNGKey(0)
    k_param, k_in, k_eps = jax.random.split(key, 3)

    params = make_params(k_param, hidden_dim, latent_dim)
    hidden = jax.random.normal(k_in, (batch, hidden_dim), jnp.float32)
    # eps ~ Uniform[0, 1) — matches torch.rand_like semantics (different RNG stream than torch).
    eps = jax.random.uniform(k_eps, (batch, latent_dim), jnp.float32)

    z_ref, mu_ref, ls_ref = reference_forward(hidden, params, eps)

    # f32 matmul path: tight check against the pure-JAX reference.
    z, mu, ls = latent_encoder_forward(hidden, params, eps, tm=256, matmul_dtype=jnp.float32)
    jax.block_until_ready((z, mu, ls))
    assert jnp.allclose(z, z_ref, atol=1e-5, rtol=1e-5)
    assert jnp.allclose(mu, mu_ref, atol=1e-5, rtol=1e-5)
    assert jnp.allclose(ls, ls_ref, atol=1e-5, rtol=1e-5)

    # bf16 MXU-input path (f32 accumulation + f32 element-wise tail): looser tolerance.
    z16, mu16, ls16 = latent_encoder_forward(hidden, params, eps, tm=256, matmul_dtype=jnp.bfloat16)
    jax.block_until_ready((z16, mu16, ls16))
    assert jnp.allclose(z16, z_ref, atol=5e-2, rtol=5e-2)
    assert jnp.allclose(mu16, mu_ref, atol=5e-2, rtol=5e-2)
    assert jnp.allclose(ls16, ls_ref, atol=5e-2, rtol=5e-2)

    print("KERNEL_OK")
</pallas_src>

<mosaic_0001>
module attributes {stable_mosaic.version = 11 : i64} {
  func.func @_latent_encoder_kernel(%arg0: i32, %arg1: memref<16x32xf32, #tpu.memory_space<vmem>>, %arg2: memref<32x128xf32, #tpu.memory_space<vmem>>, %arg3: memref<1x128xf32, #tpu.memory_space<vmem>>, %arg4: memref<128x32xf32, #tpu.memory_space<vmem>>, %arg5: memref<1x32xf32, #tpu.memory_space<vmem>>, %arg6: memref<16x16xf32, #tpu.memory_space<vmem>>, %arg7: memref<16x48xf32, #tpu.memory_space<vmem>>) attributes {dimension_semantics = [#tpu.dimension_semantics<parallel>], iteration_bounds = array<i64: 1>, scalar_prefetch = 0 : i64, scratch_operands = 0 : i64, tpu.core_type = #tpu.core_type<tc>, window_params = [{transform_indices = @transform_0, window_bounds = array<i64: 16, 32>}, {pipeline_mode = #tpu.pipeline_mode<synchronous>, transform_indices = @transform_1, window_bounds = array<i64: 32, 128>}, {pipeline_mode = #tpu.pipeline_mode<synchronous>, transform_indices = @transform_2, window_bounds = array<i64: 1, 128>}, {pipeline_mode = #tpu.pipeline_mode<synchronous>, transform_indices = @transform_3, window_bounds = array<i64: 128, 32>}, {pipeline_mode = #tpu.pipeline_mode<synchronous>, transform_indices = @transform_4, window_bounds = array<i64: 1, 32>}, {transform_indices = @transform_5, window_bounds = array<i64: 16, 16>}, {transform_indices = @transform_6, window_bounds = array<i64: 16, 48>}]} {
    %c0 = arith.constant 0 : index
    %c0_0 = arith.constant 0 : index
    %0 = vector.load %arg1[%c0, %c0_0] : memref<16x32xf32, #tpu.memory_space<vmem>>, vector<16x32xf32>
    %c0_1 = arith.constant 0 : index
    %c0_2 = arith.constant 0 : index
    %1 = vector.load %arg2[%c0_1, %c0_2] : memref<32x128xf32, #tpu.memory_space<vmem>>, vector<32x128xf32>
    %cst = arith.constant dense<0.000000e+00> : vector<16x128xf32>
    %2 = tpu.matmul %0, %1, %cst {dimension_numbers = #tpu.dot_dimension_numbers<[1], [0], [0], [1], [0, 0, 1, 1], [], []>} : vector<16x32xf32>, vector<32x128xf32>, vector<16x128xf32> -> vector<16x128xf32>
    %c0_3 = arith.constant 0 : index
    %c0_4 = arith.constant 0 : index
    %3 = vector.load %arg3[%c0_3, %c0_4] : memref<1x128xf32, #tpu.memory_space<vmem>>, vector<1x128xf32>
    %4 = vector.broadcast %3 : vector<1x128xf32> to vector<16x128xf32>
    %5 = arith.addf %2, %4 : vector<16x128xf32>
    %6 = math.tanh %5 : vector<16x128xf32>
    %c0_5 = arith.constant 0 : index
    %c0_6 = arith.constant 0 : index
    %7 = vector.load %arg4[%c0_5, %c0_6] : memref<128x32xf32, #tpu.memory_space<vmem>>, vector<128x32xf32>
    %cst_7 = arith.constant dense<0.000000e+00> : vector<16x32xf32>
    %8 = tpu.matmul %6, %7, %cst_7 {dimension_numbers = #tpu.dot_dimension_numbers<[1], [0], [0], [1], [0, 0, 1, 1], [], []>} : vector<16x128xf32>, vector<128x32xf32>, vector<16x32xf32> -> vector<16x32xf32>
    %c0_8 = arith.constant 0 : index
    %c0_9 = arith.constant 0 : index
    %9 = vector.load %arg5[%c0_8, %c0_9] : memref<1x32xf32, #tpu.memory_space<vmem>>, vector<1x32xf32>
    %10 = vector.broadcast %9 : vector<1x32xf32> to vector<16x32xf32>
    %11 = arith.addf %8, %10 : vector<16x32xf32>
    %12 = vector.extract_strided_slice %11 {offsets = [0, 0], sizes = [16, 16], strides = [1, 1]} : vector<16x32xf32> to vector<16x16xf32>
    %13 = vector.extract_strided_slice %11 {offsets = [0, 16], sizes = [16, 16], strides = [1, 1]} : vector<16x32xf32> to vector<16x16xf32>
    %c0_10 = arith.constant 0 : index
    %c0_11 = arith.constant 0 : index
    %14 = vector.load %arg6[%c0_10, %c0_11] : memref<16x16xf32, #tpu.memory_space<vmem>>, vector<16x16xf32>
    %cst_12 = arith.constant 5.000000e-01 : f32
    %15 = vector.broadcast %cst_12 : f32 to vector<16x16xf32>
    %16 = arith.mulf %13, %15 : vector<16x16xf32>
    %17 = math.exp %16 : vector<16x16xf32>
    %18 = arith.mulf %14, %17 : vector<16x16xf32>
    %19 = arith.addf %12, %18 : vector<16x16xf32>
    %20 = tpu.concatenate %19, %12, %13 in 1 : vector<16x16xf32>, vector<16x16xf32>, vector<16x16xf32> -> vector<16x48xf32>
    %c0_13 = arith.constant 0 : index
    %c0_14 = arith.constant 0 : index
    %21 = vector.load %arg7[%c0_13, %c0_14] : memref<16x48xf32, #tpu.memory_space<vmem>>, vector<16x48xf32>
    tpu.vector_store %arg7[%c0_13, %c0_14], %20 {strides = array<i32>} : memref<16x48xf32, #tpu.memory_space<vmem>>, vector<16x48xf32>,
    return
  }
  func.func @transform_0(%arg0: i32) -> (i32, i32) {
    %c0_i32 = arith.constant 0 : i32
    %c0_i32_0 = arith.constant 0 : i32
    return %arg0, %c0_i32 : i32, i32
  }
  func.func @transform_1(%arg0: i32) -> (i32, i32) {
    %c0_i32 = arith.constant 0 : i32
    %c0_i32_0 = arith.constant 0 : i32
    %c0_i32_1 = arith.constant 0 : i32
    return %c0_i32, %c0_i32_0 : i32, i32
  }
  func.func @transform_2(%arg0: i32) -> (i32, i32) {
    %c0_i32 = arith.constant 0 : i32
    %c0_i32_0 = arith.constant 0 : i32
    %c0_i32_1 = arith.constant 0 : i32
    return %c0_i32, %c0_i32_0 : i32, i32
  }
  func.func @transform_3(%arg0: i32) -> (i32, i32) {
    %c0_i32 = arith.constant 0 : i32
    %c0_i32_0 = arith.constant 0 : i32
    %c0_i32_1 = arith.constant 0 : i32
    return %c0_i32, %c0_i32_0 : i32, i32
  }
  func.func @transform_4(%arg0: i32) -> (i32, i32) {
    %c0_i32 = arith.constant 0 : i32
    %c0_i32_0 = arith.constant 0 : i32
    %c0_i32_1 = arith.constant 0 : i32
    return %c0_i32, %c0_i32_0 : i32, i32
  }
  func.func @transform_5(%arg0: i32) -> (i32, i32) {
    %c0_i32 = arith.constant 0 : i32
    %c0_i32_0 = arith.constant 0 : i32
    return %arg0, %c0_i32 : i32, i32
  }
  func.func @transform_6(%arg0: i32) -> (i32, i32) {
    %c0_i32 = arith.constant 0 : i32
    %c0_i32_0 = arith.constant 0 : i32
    return %arg0, %c0_i32 : i32, i32
  }
}

</mosaic_0001>

<llo_original>
// kernel: tpu_custom_call.1
$region0: #{tpu_custom_call.1}
  #allocation0 [shape = 'u32[]', space=smem, size = 0x4, offset = 0x4, fixed_abs, tag = 'smem constant byte address 0x4 - core index']
  #allocation1 [shape = 'u32[144,128]{1,0:T(1,128)}', space=vmem, size = 0x12000, scoped, tag = 'internal scratch']
  %s0 = inlined_call_operand.vmem [shape: f32[16,32], index: 0, kind: input, shape index: {}]
  %s1 = inlined_call_operand.vmem [shape: f32[32,128], index: 1, kind: input, shape index: {}]
  %s2 = inlined_call_operand.vmem [shape: f32[1,128], index: 2, kind: input, shape index: {}]
  %s3 = inlined_call_operand.vmem [shape: f32[128,32], index: 3, kind: input, shape index: {}]
  %s4 = inlined_call_operand.vmem [shape: f32[1,32], index: 4, kind: input, shape index: {}]
  %s5 = inlined_call_operand.vmem [shape: f32[16,16], index: 5, kind: input, shape index: {}]
  %s6 = inlined_call_operand.hbm [shape: f32[16,48], index: 6, kind: output, shape index: {}]
  %s7 = sld [smem:[#allocation0]]
  $region34: #{tpu_custom_call.1} parent=0
    _
  %s9 = ssub.s32 1, %s7
  %s10 = scalar_select 0, %s9, %s7
  $region1: #{tpu_custom_call.1} parent=0
    #allocation2 [shape = 'u8[8192]{0}', space=vmem, size = 0x2000, scoped, tag = 'output window, operand 0, single buffered']
    #allocation3 [shape = 's32[1]{0}', space=sflag, size = 0x4, scoped, tag = 'scoped memory for tpu_custom_call.1']
    %11 = vsyncpa [#allocation3], 0
    // Predicated region
    $region2: #{tpu_custom_call.1} parent=1 // pred_check
      _
    $region3: #{tpu_custom_call.1} parent=1 // pred_check_branch
      %13 = sbr.rel (0) target = $region5
    $region4: #{tpu_custom_call.1} parent=1 // pred_region
      _
    $region5: #{tpu_custom_call.1} parent=1 // pred_fallthru
      _
    // Predicated region
    $region6: #{tpu_custom_call.1} parent=1 // pred_check
      _
    $region7: #{tpu_custom_call.1} parent=1 // pred_check_branch
      %15 = sbr.rel (0) target = $region9
    $region8: #{tpu_custom_call.1} parent=1 // pred_region
      _
    $region9: #{tpu_custom_call.1} parent=1 // pred_fallthru
      _
    // Predicated region
    $region10: #{tpu_custom_call.1} parent=1 // pred_check
      _
    $region11: #{tpu_custom_call.1} parent=1 // pred_check_branch
      %17 = sbr.rel (0) target = $region13
    $region12: #{tpu_custom_call.1} parent=1 // pred_region
      _
    $region13: #{tpu_custom_call.1} parent=1 // pred_fallthru
      _
    // Predicated region
    $region14: #{tpu_custom_call.1} parent=1 // pred_check
      _
    $region15: #{tpu_custom_call.1} parent=1 // pred_check_branch
      %19 = sbr.rel (0) target = $region17
    $region16: #{tpu_custom_call.1} parent=1 // pred_region
      _
    $region17: #{tpu_custom_call.1} parent=1 // pred_fallthru
      _
    // Predicated region
    $region18: #{tpu_custom_call.1} parent=1 // pred_check
      _
    $region19: #{tpu_custom_call.1} parent=1 // pred_check_branch
      %21 = sbr.rel (0) target = $region21
    $region20: #{tpu_custom_call.1} parent=1 // pred_region
      _
    $region21: #{tpu_custom_call.1} parent=1 // pred_fallthru
      _
    // Predicated region
    $region22: #{tpu_custom_call.1} parent=1 // pred_check
      _
    $region23: #{tpu_custom_call.1} parent=1 // pred_check_branch
      %23 = sbr.rel (0) target = $region25
    $region24: #{tpu_custom_call.1} parent=1 // pred_region
      _
    $region25: #{tpu_custom_call.1} parent=1 // pred_fallthru
      _
    %v24 = vld [vmem:[%s0] sm:$0xff]
    %v25 = vld [vmem:[%s0 + $0x8] sm:$0xff]
    %v26 = vld [vmem:[%s1] sm:$0xff]
    %v27 = vld [vmem:[%s1 + $0x8] sm:$0xff]
    %v28 = vld [vmem:[%s1 + $0x10] sm:$0xff]
    %v29 = vld [vmem:[%s1 + $0x18] sm:$0xff]
    %v30 = vld [vmem:[%s2] sm:$0x1]
    %v32 = vlaneseq
    %v33 = vshrl.u32 %v32, 7
    %v34 = vsub.s32 0, %v33
    %v35 = vrot.slane %v30, %v34
    %vm37 = vcmask 261120
    %v39 = vsel %vm37, %v24, 0
    %v42 = vsel %vm37, %v25, 0
    %44 = vmatprep.subr.mxu0 0.0
    %45 = vmatpush1.msra.mxu0 %v26
    %46 = vmatprep.subr.mxu0 0.0
    %47 = vmatpush1.msra.mxu0 %v27
    %48 = vmatprep.subr.mxu0 0.0
    %49 = vmatpush1.msra.mxu0 %v28
    %50 = vmatprep.subr.mxu0 0.0
    %51 = vmatpush1.msra.mxu0 %v29
    %52 = vmatprep.subr.mxu0 0.0
    %53 = vmatpush1.msra.mxu0 0.0
    %54 = vmatprep.subr.mxu0 0.0
    %55 = vmatpush1.msra.mxu0 0.0
    %56 = vmatprep.subr.mxu0 0.0
    %57 = vmatpush1.msra.mxu0 0.0
    %58 = vmatprep.subr.mxu0 0.0
    %59 = vmatpush1.msra.mxu0 0.0
    %60 = vmatprep.subr.mxu0 0.0
    %61 = vmatpush1.msra.mxu0 0.0
    %62 = vmatprep.subr.mxu0 0.0
    %63 = vmatpush1.msra.mxu0 0.0
    %64 = vmatprep.subr.mxu0 0.0
    %65 = vmatpush1.msra.mxu0 0.0
    %66 = vmatprep.subr.mxu0 0.0
    %67 = vmatpush1.msra.mxu0 0.0
    %68 = vmatprep.subr.mxu0 0.0
    %69 = vmatpush1.msra.mxu0 0.0
    %70 = vmatprep.subr.mxu0 0.0
    %71 = vmatpush1.msra.mxu0 0.0
    %72 = vmatprep.subr.mxu0 0.0
    %73 = vmatpush1.msra.mxu0 0.0
    %74 = vmatprep.subr.mxu0 0.0
    %75 = vmatpush1.msra.mxu0 0.0
    %76 = vmatprep.subr.mxu0 0.0
    %77 = vmatpush1.msra.mxu0 0.0
    %78 = vmatprep.subr.mxu0 0.0
    %79 = vmatpush1.msra.mxu0 0.0
    %80 = vmatprep.subr.mxu0 0.0
    %81 = vmatpush1.msra.mxu0 0.0
    %82 = vmatprep.subr.mxu0 0.0
    %83 = vmatpush1.msra.mxu0 0.0
    %84 = vmatprep.subr.mxu0 0.0
    %85 = vmatpush1.msra.mxu0 0.0
    %86 = vmatprep.subr.mxu0 0.0
    %87 = vmatpush1.msra.mxu0 0.0
    %88 = vmatprep.subr.mxu0 0.0
    %89 = vmatpush1.msra.mxu0 0.0
    %90 = vmatprep.subr.mxu0 0.0
    %91 = vmatpush1.msra.mxu0 0.0
    %92 = vmatprep.subr.mxu0 0.0
    %93 = vmatpush1.msra.mxu0 0.0
    %94 = vmatprep.subr.mxu0 0.0
    %95 = vmatpush1.msra.mxu0 0.0
    %96 = vmatprep.subr.mxu0 0.0
    %97 = vmatpush1.msra.mxu0 0.0
    %98 = vmatprep.subr.mxu0 0.0
    %99 = vmatpush1.msra.mxu0 0.0
    %100 = vmatprep.subr.mxu0 0.0
    %101 = vmatpush1.msra.mxu0 0.0
    %102 = vmatprep.subr.mxu0 0.0
    %103 = vmatpush1.msra.mxu0 0.0
    %104 = vmatprep.subr.mxu0 0.0
    %105 = vmatpush1.msra.mxu0 0.0
    %106 = vmatprep.subr.mxu0 0.0
    %107 = vmatpush1.msra.mxu0 0.0
    %108 = vmatprep.mubr.f32.mxu0 0.0
    %109 = vmatmul.mubr.f32.gmra.mrb[0].mxu0 %v39
    %v110 = vpop.f32.mrb[0].mxu0
    %v111 = vadd.f32 %v35, %v110
    %v112 = vpop.f32.mrb[0].mxu0
    %113 = vmatprep.mubr.f32.mxu0 0.0
    %114 = vmatmul.mubr.f32.gmra.mrb[0].mxu0 %v42
    %v115 = vpop.f32.mrb[0].mxu0
    %v116 = vadd.f32 %v35, %v115
    %v117 = vpop.f32.mrb[0].mxu0
    %118 = vdwg.mxu0
    %v119 = vtanh.pop %v111
    %v120 = vtanh.pop %v116
    %v121 = vld [vmem:[%s3] sm:$0xff]
    %v122 = vld [vmem:[%s3 + $0x8] sm:$0xff]
    %v123 = vld [vmem:[%s3 + $0x10] sm:$0xff]
    %v124 = vld [vmem:[%s3 + $0x18] sm:$0xff]
    %v125 = vld [vmem:[%s3 + $0x20] sm:$0xff]
    %v126 = vld [vmem:[%s3 + $0x28] sm:$0xff]
    %v127 = vld [vmem:[%s3 + $0x30] sm:$0xff]
    %v128 = vld [vmem:[%s3 + $0x38] sm:$0xff]
    %v129 = vld [vmem:[%s3 + $0x40] sm:$0xff]
    %v130 = vld [vmem:[%s3 + $0x48] sm:$0xff]
    %v131 = vld [vmem:[%s3 + $0x50] sm:$0xff]
    %v132 = vld [vmem:[%s3 + $0x58] sm:$0xff]
    %v133 = vld [vmem:[%s3 + $0x60] sm:$0xff]
    %v134 = vld [vmem:[%s3 + $0x68] sm:$0xff]
    %v135 = vld [vmem:[%s3 + $0x70] sm:$0xff]
    %v136 = vld [vmem:[%s3 + $0x78] sm:$0xff]
    %v137 = vld [vmem:[%s4] sm:$0x1]
    %v139 = vlaneseq
    %v140 = vshrl.u32 %v139, 7
    %v141 = vsub.s32 0, %v140
    %v142 = vrot.slane %v137, %v141
    %144 = vmatprep.subr.mxu0 0.0
    %145 = vmatpush1.msra.mxu0 %v121
    %146 = vmatprep.subr.mxu0 0.0
    %147 = vmatpush1.msra.mxu0 %v122
    %148 = vmatprep.subr.mxu0 0.0
    %149 = vmatpush1.msra.mxu0 %v123
    %150 = vmatprep.subr.mxu0 0.0
    %151 = vmatpush1.msra.mxu0 %v124
    %152 = vmatprep.subr.mxu0 0.0
    %153 = vmatpush1.msra.mxu0 %v125
    %154 = vmatprep.subr.mxu0 0.0
    %155 = vmatpush1.msra.mxu0 %v126
    %156 = vmatprep.subr.mxu0 0.0
    %157 = vmatpush1.msra.mxu0 %v127
    %158 = vmatprep.subr.mxu0 0.0
    %159 = vmatpush1.msra.mxu0 %v128
    %160 = vmatprep.subr.mxu0 0.0
    %161 = vmatpush1.msra.mxu0 %v129
    %162 = vmatprep.subr.mxu0 0.0
    %163 = vmatpush1.msra.mxu0 %v130
    %164 = vmatprep.subr.mxu0 0.0
    %165 = vmatpush1.msra.mxu0 %v131
    %166 = vmatprep.subr.mxu0 0.0
    %167 = vmatpush1.msra.mxu0 %v132
    %168 = vmatprep.subr.mxu0 0.0
    %169 = vmatpush1.msra.mxu0 %v133
    %170 = vmatprep.subr.mxu0 0.0
    %171 = vmatpush1.msra.mxu0 %v134
    %172 = vmatprep.subr.mxu0 0.0
    %173 = vmatpush1.msra.mxu0 %v135
    %174 = vmatprep.subr.mxu0 0.0
    %175 = vmatpush1.msra.mxu0 %v136
    %176 = vmatprep.subr.mxu0 0.0
    %177 = vmatpush1.msra.mxu0 0.0
    %178 = vmatprep.subr.mxu0 0.0
    %179 = vmatpush1.msra.mxu0 0.0
    %180 = vmatprep.subr.mxu0 0.0
    %181 = vmatpush1.msra.mxu0 0.0
    %182 = vmatprep.subr.mxu0 0.0
    %183 = vmatpush1.msra.mxu0 0.0
    %184 = vmatprep.subr.mxu0 0.0
    %185 = vmatpush1.msra.mxu0 0.0
    %186 = vmatprep.subr.mxu0 0.0
    %187 = vmatpush1.msra.mxu0 0.0
    %188 = vmatprep.subr.mxu0 0.0
    %189 = vmatpush1.msra.mxu0 0.0
    %190 = vmatprep.subr.mxu0 0.0
    %191 = vmatpush1.msra.mxu0 0.0
    %192 = vmatprep.subr.mxu0 0.0
    %193 = vmatpush1.msra.mxu0 0.0
    %194 = vmatprep.subr.mxu0 0.0
    %195 = vmatpush1.msra.mxu0 0.0
    %196 = vmatprep.subr.mxu0 0.0
    %197 = vmatpush1.msra.mxu0 0.0
    %198 = vmatprep.subr.mxu0 0.0
    %199 = vmatpush1.msra.mxu0 0.0
    %200 = vmatprep.subr.mxu0 0.0
    %201 = vmatpush1.msra.mxu0 0.0
    %202 = vmatprep.subr.mxu0 0.0
    %203 = vmatpush1.msra.mxu0 0.0
    %204 = vmatprep.subr.mxu0 0.0
    %205 = vmatpush1.msra.mxu0 0.0
    %206 = vmatprep.subr.mxu0 0.0
    %207 = vmatpush1.msra.mxu0 0.0
    %208 = vmatprep.mubr.f32.mxu0 0.0
    %209 = vmatmul.mubr.f32.gmra.mrb[0].mxu0 %v119
    %v210 = vpop.f32.mrb[0].mxu0
    %v211 = vadd.f32 %v142, %v210
    %v212 = vpop.f32.mrb[0].mxu0
    %213 = vmatprep.mubr.f32.mxu0 0.0
    %214 = vmatmul.mubr.f32.gmra.mrb[0].mxu0 %v120
    %v215 = vpop.f32.mrb[0].mxu0
    %v216 = vadd.f32 %v142, %v215
    %v217 = vpop.f32.mrb[0].mxu0
    %218 = vdwg.mxu0
    %v219 = vld [vmem:[%s5] sm:$0xff]
    %v220 = vld [vmem:[%s5 + $0x8] sm:$0xff]
    %v221 = vmul.f32 %v211, 0.5
    %v222 = vmul.f32 %v216, 0.5
    %v223 = vmul.f32 %v221, 1.442695
    %v224 = vpow.pop %v223
    %v225 = vmul.f32 %v222, 1.442695
    %v226 = vpow.pop %v225
    %229 = vrot.lane.b32.xlu0 %v224, 112
    %v230 = vpop.permute.xlu0 %229
    %231 = vrot.lane.b32.xlu0 %v226, 112
    %v232 = vpop.permute.xlu0 %231
    %v235 = vmul.f32 %v219, %v230
    %v236 = vmul.f32 %v220, %v232
    %v237 = vadd.f32 %v211, %v235
    %v238 = vadd.f32 %v216, %v236
    %241 = vrot.lane.b32.xlu0 %v211, 16
    %v242 = vpop.permute.xlu0 %241
    %243 = vrot.lane.b32.xlu0 %v216, 16
    %v244 = vpop.permute.xlu0 %243
    %vm247 = vcmask 130048
    %v248 = vsel %vm247, %v237, %v242
    %v249 = vsel %vm247, %v238, %v244
    %v250 = vsel %vm37, %v248, %v242
    %v251 = vsel %vm37, %v249, %v244
    %vm252 = vcmask 392192
    %253 = vst.msk [vmem:[#allocation2] sm:$0xff] %vm252, %v250
    %254 = vst.msk [vmem:[#allocation2 + $0x8] sm:$0xff] %vm252, %v251
    // Predicated region
    $region26: #{tpu_custom_call.1} parent=1 // pred_check
      _
    $region27: #{tpu_custom_call.1} parent=1 // pred_check_branch
      %256 = sbr.rel (0) target = $region29
    $region28: #{tpu_custom_call.1} parent=1 // pred_region
      %s258 = ssub.s32 256, 256
      %259 = vsyncadd [#allocation3], %s258
      %s260 = sshll.u32 [#allocation2], 4
      %s261 = int_to_ptr.vmem [resolvable:$true] %s260
      %266 = dma.vmem_to_hbm [thread:$0]  %s261, 256, %s6, [#allocation3], 128, 128, 8
    $region29: #{tpu_custom_call.1} parent=1 // pred_fallthru
      _
    // Predicated region
    $region30: #{tpu_custom_call.1} parent=1 // pred_check
      _
    $region31: #{tpu_custom_call.1} parent=1 // pred_check_branch
      %268 = sbr.rel (0) target = $region33
    $region32: #{tpu_custom_call.1} parent=1 // pred_region
      %269 = dma.done [#allocation3], 256
    $region33: #{tpu_custom_call.1} parent=1 // pred_fallthru
      _
    %270 = vsyncpa [#allocation3], 1

</llo_original>
